<compile_context>
chip_gen: v5e
topology: v5e:2x2
jax: 0.10.0
libtpu: 0.0.40
codegen_flags: <defaults>
</compile_context>

<pallas_src>
import functools

import jax
import jax.numpy as jnp
import numpy as np
from jax.experimental import pallas as pl
from jax.experimental.pallas import tpu as pltpu


def _glore_kernel(x_ref, wtheta_ref, btheta_ref, wphi_ref, bphi_ref,
                  wg_ref, bg_ref, wext_ref, gamma_ref, beta_ref,
                  mean_ref, var_ref, out_ref, *, eps, inv_l):
    x = x_ref[0]                                                    # (C, L)

    # 1x1 convs as channels-first matmuls: (N,C)@(C,L), (S,C)@(C,L).
    theta = jnp.dot(wtheta_ref[...], x,
                    preferred_element_type=jnp.float32) + btheta_ref[...]   # (N, L)
    phi = jnp.dot(wphi_ref[...], x,
                  preferred_element_type=jnp.float32) + bphi_ref[...]       # (S, L)

    # V = (theta @ phi^T) / (H*W) without materializing a transpose.
    V = jnp.einsum("nl,sl->ns", theta, phi,
                   preferred_element_type=jnp.float32) * inv_l              # (N, S)

    # Self-similarity adjacency: softmax(normalize(V) @ normalize(V)^T).
    # F.normalize(eps=1e-12) == V * rsqrt(max(sum(V^2), 1e-24)).
    inv_nrm = jax.lax.rsqrt(jnp.maximum(jnp.sum(V * V, axis=-1, keepdims=True),
                                        1e-24))
    Vn = V * inv_nrm
    sim = jnp.einsum("ns,ms->nm", Vn, Vn,
                     preferred_element_type=jnp.float32)                    # (N, N)
    sim = sim - jnp.max(sim, axis=-1, keepdims=True)
    e = jnp.exp(sim)
    adj = e * pl.reciprocal(jnp.sum(e, axis=-1, keepdims=True), approx=True)

    # GraphConvolution: adj @ (V @ Wg) + bg + V
    support = jnp.dot(V, wg_ref[...], preferred_element_type=jnp.float32)   # (N, S)
    new_v = jnp.dot(adj, support,
                    preferred_element_type=jnp.float32) + bg_ref[...] + V   # (N, S)

    # Back-project to pixels (lane-dense over L) and extend channels.
    y = jnp.einsum("ns,nl->sl", new_v, theta,
                   preferred_element_type=jnp.float32)                      # (S, L)
    yc = jnp.dot(wext_ref[...], y, preferred_element_type=jnp.float32)      # (C, L)

    # BatchNorm (eval mode) + residual; per-channel params are (C, 1) and
    # broadcast across the lane axis L. gamma is folded into inv_std so only
    # one full-width multiply is issued.
    scale = jax.lax.rsqrt(var_ref[...] + eps) * gamma_ref[...]              # (C, 1)
    ybn = (yc - mean_ref[...]) * scale + beta_ref[...]
    out_ref[0] = (ybn + x).astype(out_ref.dtype)


def global_reason_unit(x_nchw, params, *, eps=1e-5):
    """x_nchw: (B, C, H, W) float32. Returns (B, C, H, W)."""
    Bn, C, H, W = x_nchw.shape
    L = H * W

    # NCHW -> (B, C, L): a pure reshape, no transpose needed.
    x_flat = x_nchw.reshape(Bn, C, L)

    kern = functools.partial(_glore_kernel, eps=eps, inv_l=1.0 / float(L))

    def full(arr):
        shape = arr.shape
        return pl.BlockSpec(shape, lambda b: (0,) * len(shape))

    out_flat = pl.pallas_call(
        kern,
        out_shape=jax.ShapeDtypeStruct((Bn, C, L), x_flat.dtype),
        grid=(Bn,),
        in_specs=[
            pl.BlockSpec((1, C, L), lambda b: (b, 0, 0)),   # x
            full(params["w_theta"]), full(params["b_theta"]),   # conv_theta
            full(params["w_phi"]), full(params["b_phi"]),       # conv_phi
            full(params["w_g"]), full(params["b_g"]),           # graph_conv
            full(params["w_ext"]),                              # extend_dim
            full(params["gamma"]), full(params["beta"]),        # bn affine
            full(params["run_mean"]), full(params["run_var"]),  # bn running stats
        ],
        out_specs=pl.BlockSpec((1, C, L), lambda b: (b, 0, 0)),
        compiler_params=pltpu.CompilerParams(
            dimension_semantics=("parallel",)),
    )(x_flat,
      params["w_theta"], params["b_theta"],
      params["w_phi"], params["b_phi"],
      params["w_g"], params["b_g"],
      params["w_ext"],
      params["gamma"], params["beta"], params["run_mean"], params["run_var"])

    return out_flat.reshape(Bn, C, H, W)


def reference_jax(x_nchw, params, *, eps=1e-5):
    """Pure-JAX reference mirroring the PyTorch forward (eval-mode BN)."""
    Bn, C, H, W = x_nchw.shape
    L = H * W
    xf = x_nchw.reshape(Bn, C, L)
    theta = jnp.einsum("nc,bcl->bnl", params["w_theta"], xf) + params["b_theta"]
    phi = jnp.einsum("sc,bcl->bsl", params["w_phi"], xf) + params["b_phi"]
    V = jnp.einsum("bnl,bsl->bns", theta, phi) / L
    nrm = jnp.maximum(jnp.linalg.norm(V, axis=-1, keepdims=True), 1e-12)
    Vn = V / nrm
    adj = jax.nn.softmax(jnp.einsum("bns,bms->bnm", Vn, Vn), axis=-1)
    new_v = jnp.einsum("bnm,bms->bns", adj, V @ params["w_g"]) + params["b_g"] + V
    Y = jnp.einsum("bns,bnl->bsl", new_v, theta)            # (B, S, L)
    Yc = jnp.einsum("cs,bsl->bcl", params["w_ext"], Y)      # (B, C, L)
    ybn = ((Yc - params["run_mean"]) * jax.lax.rsqrt(params["run_var"] + eps)
           * params["gamma"] + params["beta"])
    out = ybn + xf
    return out.reshape(Bn, C, H, W)


def make_params(key, in_channel, num_state, num_node, *, faithful_bn=True):
    """Deterministic parameter init matching the module's __init__ shapes.

    Weights are stored channels-first for the (C, L) layout:
      w_theta: (num_node, C), w_phi: (num_state, C), w_ext: (C, num_state);
      conv biases are column vectors (broadcast over L), BN vectors are (C, 1).
    """
    ks = jax.random.split(key, 8)
    bc = 1.0 / np.sqrt(in_channel)        # conv fan_in = C (1x1 kernel)
    bs = 1.0 / np.sqrt(num_state)
    u = lambda k, shape, b: jax.random.uniform(k, shape, jnp.float32, -b, b)
    params = {
        "w_theta": u(ks[0], (num_node, in_channel), bc),
        "b_theta": u(ks[1], (num_node, 1), bc),
        "w_phi": u(ks[2], (num_state, in_channel), bc),
        "b_phi": u(ks[3], (num_state, 1), bc),
        "w_g": u(ks[4], (num_state, num_state), bs),
        "b_g": u(ks[5], (1, num_state), bs),
        "w_ext": u(ks[6], (in_channel, num_state), bs),
        "run_mean": jnp.zeros((in_channel, 1), jnp.float32),
        "run_var": jnp.ones((in_channel, 1), jnp.float32),
    }
    if faithful_bn:
        # nn.init.constant_(bn.weight, 0); nn.init.constant_(bn.bias, 0)
        params["gamma"] = jnp.zeros((in_channel, 1), jnp.float32)
        params["beta"] = jnp.zeros((in_channel, 1), jnp.float32)
    else:
        params["gamma"] = u(ks[7], (in_channel, 1), 1.0) + 1.0
        params["beta"] = jnp.full((in_channel, 1), 0.1, jnp.float32)
    return params


if __name__ == "__main__":
    B, C, H, W = 2, 8, 16, 16        # in_channel = 8, L = 256 (lane-dense)
    NUM_STATE, NUM_NODE = 32, 16

    key = jax.random.PRNGKey(0)
    kx, kp = jax.random.split(key)
    x = jax.random.normal(kx, (B, C, H, W), jnp.float32)

    # Numerical check of the full path with a non-trivial BN (gamma != 0).
    params_chk = make_params(kp, C, NUM_STATE, NUM_NODE, faithful_bn=False)
    out_chk = jax.block_until_ready(global_reason_unit(x, params_chk))
    ref_chk = jax.block_until_ready(reference_jax(x, params_chk))
    np.testing.assert_allclose(np.asarray(out_chk), np.asarray(ref_chk),
                               rtol=2e-2, atol=2e-2)

    # Faithful run: BN weight/bias initialized to 0 exactly as in __init__.
    params = make_params(kp, C, NUM_STATE, NUM_NODE, faithful_bn=True)
    out = jax.block_until_ready(global_reason_unit(x, params))
    assert out.shape == (B, C, H, W)
    assert bool(jnp.all(jnp.isfinite(out)))

    print("KERNEL_OK")
</pallas_src>

<mosaic_0001>
module attributes {stable_mosaic.version = 11 : i64} {
  func.func @_glore_kernel(%arg0: i32, %arg1: memref<1x8x256xf32, #tpu.memory_space<vmem>>, %arg2: memref<16x8xf32, #tpu.memory_space<vmem>>, %arg3: memref<16x1xf32, #tpu.memory_space<vmem>>, %arg4: memref<32x8xf32, #tpu.memory_space<vmem>>, %arg5: memref<32x1xf32, #tpu.memory_space<vmem>>, %arg6: memref<32x32xf32, #tpu.memory_space<vmem>>, %arg7: memref<1x32xf32, #tpu.memory_space<vmem>>, %arg8: memref<8x32xf32, #tpu.memory_space<vmem>>, %arg9: memref<8x1xf32, #tpu.memory_space<vmem>>, %arg10: memref<8x1xf32, #tpu.memory_space<vmem>>, %arg11: memref<8x1xf32, #tpu.memory_space<vmem>>, %arg12: memref<8x1xf32, #tpu.memory_space<vmem>>, %arg13: memref<1x8x256xf32, #tpu.memory_space<vmem>>) attributes {dimension_semantics = [#tpu.dimension_semantics<parallel>], iteration_bounds = array<i64: 2>, scalar_prefetch = 0 : i64, scratch_operands = 0 : i64, tpu.core_type = #tpu.core_type<tc>, window_params = [{transform_indices = @transform_0, window_bounds = array<i64: 1, 8, 256>}, {pipeline_mode = #tpu.pipeline_mode<synchronous>, transform_indices = @transform_1, window_bounds = array<i64: 16, 8>}, {pipeline_mode = #tpu.pipeline_mode<synchronous>, transform_indices = @transform_2, window_bounds = array<i64: 16, 1>}, {pipeline_mode = #tpu.pipeline_mode<synchronous>, transform_indices = @transform_3, window_bounds = array<i64: 32, 8>}, {pipeline_mode = #tpu.pipeline_mode<synchronous>, transform_indices = @transform_4, window_bounds = array<i64: 32, 1>}, {pipeline_mode = #tpu.pipeline_mode<synchronous>, transform_indices = @transform_5, window_bounds = array<i64: 32, 32>}, {pipeline_mode = #tpu.pipeline_mode<synchronous>, transform_indices = @transform_6, window_bounds = array<i64: 1, 32>}, {pipeline_mode = #tpu.pipeline_mode<synchronous>, transform_indices = @transform_7, window_bounds = array<i64: 8, 32>}, {pipeline_mode = #tpu.pipeline_mode<synchronous>, transform_indices = @transform_8, window_bounds = array<i64: 8, 1>}, {pipeline_mode = #tpu.pipeline_mode<synchronous>, transform_indices = @transform_9, window_bounds = array<i64: 8, 1>}, {pipeline_mode = #tpu.pipeline_mode<synchronous>, transform_indices = @transform_10, window_bounds = array<i64: 8, 1>}, {pipeline_mode = #tpu.pipeline_mode<synchronous>, transform_indices = @transform_11, window_bounds = array<i64: 8, 1>}, {transform_indices = @transform_12, window_bounds = array<i64: 1, 8, 256>}]} {
    %c0 = arith.constant 0 : index
    %c0_0 = arith.constant 0 : index
    %c0_1 = arith.constant 0 : index
    %0 = vector.load %arg1[%c0, %c0_0, %c0_1] : memref<1x8x256xf32, #tpu.memory_space<vmem>>, vector<1x8x256xf32>
    %1 = vector.shape_cast %0 : vector<1x8x256xf32> to vector<8x256xf32>
    %c0_2 = arith.constant 0 : index
    %c0_3 = arith.constant 0 : index
    %2 = vector.load %arg2[%c0_2, %c0_3] : memref<16x8xf32, #tpu.memory_space<vmem>>, vector<16x8xf32>
    %cst = arith.constant dense<0.000000e+00> : vector<16x256xf32>
    %3 = tpu.matmul %2, %1, %cst {dimension_numbers = #tpu.dot_dimension_numbers<[1], [0], [0], [1], [0, 0, 1, 1], [], []>} : vector<16x8xf32>, vector<8x256xf32>, vector<16x256xf32> -> vector<16x256xf32>
    %c0_4 = arith.constant 0 : index
    %c0_5 = arith.constant 0 : index
    %4 = vector.load %arg3[%c0_4, %c0_5] : memref<16x1xf32, #tpu.memory_space<vmem>>, vector<16x1xf32>
    %5 = vector.broadcast %4 : vector<16x1xf32> to vector<16x256xf32>
    %6 = arith.addf %3, %5 : vector<16x256xf32>
    %c0_6 = arith.constant 0 : index
    %c0_7 = arith.constant 0 : index
    %7 = vector.load %arg4[%c0_6, %c0_7] : memref<32x8xf32, #tpu.memory_space<vmem>>, vector<32x8xf32>
    %cst_8 = arith.constant dense<0.000000e+00> : vector<32x256xf32>
    %8 = tpu.matmul %7, %1, %cst_8 {dimension_numbers = #tpu.dot_dimension_numbers<[1], [0], [0], [1], [0, 0, 1, 1], [], []>} : vector<32x8xf32>, vector<8x256xf32>, vector<32x256xf32> -> vector<32x256xf32>
    %c0_9 = arith.constant 0 : index
    %c0_10 = arith.constant 0 : index
    %9 = vector.load %arg5[%c0_9, %c0_10] : memref<32x1xf32, #tpu.memory_space<vmem>>, vector<32x1xf32>
    %10 = vector.broadcast %9 : vector<32x1xf32> to vector<32x256xf32>
    %11 = arith.addf %8, %10 : vector<32x256xf32>
    "tpu.trace_start"() <{level = 10 : i32, message = "nl,sl->ns"}> : () -> ()
    %cst_11 = arith.constant dense<0.000000e+00> : vector<16x32xf32>
    %12 = tpu.matmul %6, %11, %cst_11 {dimension_numbers = #tpu.dot_dimension_numbers<[1], [1], [0], [0], [0, 0, 1, 0], [], []>} : vector<16x256xf32>, vector<32x256xf32>, vector<16x32xf32> -> vector<16x32xf32>
    "tpu.trace_stop"() : () -> ()
    %cst_12 = arith.constant 3.906250e-03 : f32
    %13 = vector.broadcast %cst_12 : f32 to vector<16x32xf32>
    %14 = arith.mulf %12, %13 : vector<16x32xf32>
    %15 = arith.mulf %14, %14 : vector<16x32xf32>
    %cst_13 = arith.constant dense<0.000000e+00> : vector<16xf32>
    %16 = vector.multi_reduction <add>, %15, %cst_13 [1] : vector<16x32xf32> to vector<16xf32>
    %17 = vector.shape_cast %16 : vector<16xf32> to vector<16x1xf32>
    %cst_14 = arith.constant 1.000000e-24 : f32
    %18 = vector.broadcast %cst_14 : f32 to vector<16x1xf32>
    %19 = arith.maximumf %17, %18 : vector<16x1xf32>
    %20 = math.rsqrt %19 : vector<16x1xf32>
    %21 = vector.broadcast %20 : vector<16x1xf32> to vector<16x32xf32>
    %22 = arith.mulf %14, %21 : vector<16x32xf32>
    "tpu.trace_start"() <{level = 10 : i32, message = "ns,ms->nm"}> : () -> ()
    %cst_15 = arith.constant dense<0.000000e+00> : vector<16x16xf32>
    %23 = tpu.matmul %22, %22, %cst_15 {dimension_numbers = #tpu.dot_dimension_numbers<[1], [1], [0], [0], [0, 0, 1, 0], [], []>} : vector<16x32xf32>, vector<16x32xf32>, vector<16x16xf32> -> vector<16x16xf32>
    "tpu.trace_stop"() : () -> ()
    %cst_16 = arith.constant dense<0xFF800000> : vector<16xf32>
    %24 = vector.multi_reduction <maximumf>, %23, %cst_16 [1] : vector<16x16xf32> to vector<16xf32>
    %25 = vector.shape_cast %24 : vector<16xf32> to vector<16x1xf32>
    %26 = vector.broadcast %25 : vector<16x1xf32> to vector<16x16xf32>
    %27 = arith.subf %23, %26 : vector<16x16xf32>
    %28 = math.exp %27 : vector<16x16xf32>
    %cst_17 = arith.constant dense<0.000000e+00> : vector<16xf32>
    %29 = vector.multi_reduction <add>, %28, %cst_17 [1] : vector<16x16xf32> to vector<16xf32>
    %30 = vector.shape_cast %29 : vector<16xf32> to vector<16x1xf32>
    %31 = tpu.reciprocal %30 {approx = true} : vector<16x1xf32> -> vector<16x1xf32>
    %32 = vector.broadcast %31 : vector<16x1xf32> to vector<16x16xf32>
    %33 = arith.mulf %28, %32 : vector<16x16xf32>
    %c0_18 = arith.constant 0 : index
    %c0_19 = arith.constant 0 : index
    %34 = vector.load %arg6[%c0_18, %c0_19] : memref<32x32xf32, #tpu.memory_space<vmem>>, vector<32x32xf32>
    %cst_20 = arith.constant dense<0.000000e+00> : vector<16x32xf32>
    %35 = tpu.matmul %14, %34, %cst_20 {dimension_numbers = #tpu.dot_dimension_numbers<[1], [0], [0], [1], [0, 0, 1, 1], [], []>} : vector<16x32xf32>, vector<32x32xf32>, vector<16x32xf32> -> vector<16x32xf32>
    %cst_21 = arith.constant dense<0.000000e+00> : vector<16x32xf32>
    %36 = tpu.matmul %33, %35, %cst_21 {dimension_numbers = #tpu.dot_dimension_numbers<[1], [0], [0], [1], [0, 0, 1, 1], [], []>} : vector<16x16xf32>, vector<16x32xf32>, vector<16x32xf32> -> vector<16x32xf32>
    %c0_22 = arith.constant 0 : index
    %c0_23 = arith.constant 0 : index
    %37 = vector.load %arg7[%c0_22, %c0_23] : memref<1x32xf32, #tpu.memory_space<vmem>>, vector<1x32xf32>
    %38 = vector.broadcast %37 : vector<1x32xf32> to vector<16x32xf32>
    %39 = arith.addf %36, %38 : vector<16x32xf32>
    %40 = arith.addf %39, %14 : vector<16x32xf32>
    "tpu.trace_start"() <{level = 10 : i32, message = "ns,nl->sl"}> : () -> ()
    %cst_24 = arith.constant dense<0.000000e+00> : vector<32x256xf32>
    %41 = tpu.matmul %40, %6, %cst_24 {dimension_numbers = #tpu.dot_dimension_numbers<[0], [0], [1], [1], [0, 1, 1, 1], [], []>} : vector<16x32xf32>, vector<16x256xf32>, vector<32x256xf32> -> vector<32x256xf32>
    "tpu.trace_stop"() : () -> ()
    %c0_25 = arith.constant 0 : index
    %c0_26 = arith.constant 0 : index
    %42 = vector.load %arg8[%c0_25, %c0_26] : memref<8x32xf32, #tpu.memory_space<vmem>>, vector<8x32xf32>
    %cst_27 = arith.constant dense<0.000000e+00> : vector<8x256xf32>
    %43 = tpu.matmul %42, %41, %cst_27 {dimension_numbers = #tpu.dot_dimension_numbers<[1], [0], [0], [1], [0, 0, 1, 1], [], []>} : vector<8x32xf32>, vector<32x256xf32>, vector<8x256xf32> -> vector<8x256xf32>
    %c0_28 = arith.constant 0 : index
    %c0_29 = arith.constant 0 : index
    %44 = vector.load %arg12[%c0_28, %c0_29] : memref<8x1xf32, #tpu.memory_space<vmem>>, vector<8x1xf32>
    %cst_30 = arith.constant 9.99999974E-6 : f32
    %45 = vector.broadcast %cst_30 : f32 to vector<8x1xf32>
    %46 = arith.addf %44, %45 : vector<8x1xf32>
    %47 = math.rsqrt %46 : vector<8x1xf32>
    %c0_31 = arith.constant 0 : index
    %c0_32 = arith.constant 0 : index
    %48 = vector.load %arg9[%c0_31, %c0_32] : memref<8x1xf32, #tpu.memory_space<vmem>>, vector<8x1xf32>
    %49 = arith.mulf %47, %48 : vector<8x1xf32>
    %c0_33 = arith.constant 0 : index
    %c0_34 = arith.constant 0 : index
    %50 = vector.load %arg11[%c0_33, %c0_34] : memref<8x1xf32, #tpu.memory_space<vmem>>, vector<8x1xf32>
    %51 = vector.broadcast %50 : vector<8x1xf32> to vector<8x256xf32>
    %52 = arith.subf %43, %51 : vector<8x256xf32>
    %53 = vector.broadcast %49 : vector<8x1xf32> to vector<8x256xf32>
    %54 = arith.mulf %52, %53 : vector<8x256xf32>
    %c0_35 = arith.constant 0 : index
    %c0_36 = arith.constant 0 : index
    %55 = vector.load %arg10[%c0_35, %c0_36] : memref<8x1xf32, #tpu.memory_space<vmem>>, vector<8x1xf32>
    %56 = vector.broadcast %55 : vector<8x1xf32> to vector<8x256xf32>
    %57 = arith.addf %54, %56 : vector<8x256xf32>
    %58 = arith.addf %57, %1 : vector<8x256xf32>
    %c0_37 = arith.constant 0 : index
    %c0_38 = arith.constant 0 : index
    %c0_39 = arith.constant 0 : index
    %59 = vector.load %arg13[%c0_37, %c0_38, %c0_39] : memref<1x8x256xf32, #tpu.memory_space<vmem>>, vector<1x8x256xf32>
    %60 = vector.shape_cast %59 : vector<1x8x256xf32> to vector<8x256xf32>
    %61 = vector.shape_cast %58 : vector<8x256xf32> to vector<1x8x256xf32>
    tpu.vector_store %arg13[%c0_37, %c0_38, %c0_39], %61 {strides = array<i32>} : memref<1x8x256xf32, #tpu.memory_space<vmem>>, vector<1x8x256xf32>,
    return
  }
  func.func @transform_0(%arg0: i32) -> (i32, i32, i32) {
    %c0_i32 = arith.constant 0 : i32
    %c0_i32_0 = arith.constant 0 : i32
    %c0_i32_1 = arith.constant 0 : i32
    return %arg0, %c0_i32, %c0_i32_0 : i32, i32, i32
  }
  func.func @transform_1(%arg0: i32) -> (i32, i32) {
    %c0_i32 = arith.constant 0 : i32
    %c0_i32_0 = arith.constant 0 : i32
    %c0_i32_1 = arith.constant 0 : i32
    return %c0_i32, %c0_i32_0 : i32, i32
  }
  func.func @transform_2(%arg0: i32) -> (i32, i32) {
    %c0_i32 = arith.constant 0 : i32
    %c0_i32_0 = arith.constant 0 : i32
    %c0_i32_1 = arith.constant 0 : i32
    return %c0_i32, %c0_i32_0 : i32, i32
  }
  func.func @transform_3(%arg0: i32) -> (i32, i32) {
    %c0_i32 = arith.constant 0 : i32
    %c0_i32_0 = arith.constant 0 : i32
    %c0_i32_1 = arith.constant 0 : i32
    return %c0_i32, %c0_i32_0 : i32, i32
  }
  func.func @transform_4(%arg0: i32) -> (i32, i32) {
    %c0_i32 = arith.constant 0 : i32
    %c0_i32_0 = arith.constant 0 : i32
    %c0_i32_1 = arith.constant 0 : i32
    return %c0_i32, %c0_i32_0 : i32, i32
  }
  func.func @transform_5(%arg0: i32) -> (i32, i32) {
    %c0_i32 = arith.constant 0 : i32
    %c0_i32_0 = arith.constant 0 : i32
    %c0_i32_1 = arith.constant 0 : i32
    return %c0_i32, %c0_i32_0 : i32, i32
  }
  func.func @transform_6(%arg0: i32) -> (i32, i32) {
    %c0_i32 = arith.constant 0 : i32
    %c0_i32_0 = arith.constant 0 : i32
    %c0_i32_1 = arith.constant 0 : i32
    return %c0_i32, %c0_i32_0 : i32, i32
  }
  func.func @transform_7(%arg0: i32) -> (i32, i32) {
    %c0_i32 = arith.constant 0 : i32
    %c0_i32_0 = arith.constant 0 : i32
    %c0_i32_1 = arith.constant 0 : i32
    return %c0_i32, %c0_i32_0 : i32, i32
  }
  func.func @transform_8(%arg0: i32) -> (i32, i32) {
    %c0_i32 = arith.constant 0 : i32
    %c0_i32_0 = arith.constant 0 : i32
    %c0_i32_1 = arith.constant 0 : i32
    return %c0_i32, %c0_i32_0 : i32, i32
  }
  func.func @transform_9(%arg0: i32) -> (i32, i32) {
    %c0_i32 = arith.constant 0 : i32
    %c0_i32_0 = arith.constant 0 : i32
    %c0_i32_1 = arith.constant 0 : i32
    return %c0_i32, %c0_i32_0 : i32, i32
  }
  func.func @transform_10(%arg0: i32) -> (i32, i32) {
    %c0_i32 = arith.constant 0 : i32
    %c0_i32_0 = arith.constant 0 : i32
    %c0_i32_1 = arith.constant 0 : i32
    return %c0_i32, %c0_i32_0 : i32, i32
  }
  func.func @transform_11(%arg0: i32) -> (i32, i32) {
    %c0_i32 = arith.constant 0 : i32
    %c0_i32_0 = arith.constant 0 : i32
    %c0_i32_1 = arith.constant 0 : i32
    return %c0_i32, %c0_i32_0 : i32, i32
  }
  func.func @transform_12(%arg0: i32) -> (i32, i32, i32) {
    %c0_i32 = arith.constant 0 : i32
    %c0_i32_0 = arith.constant 0 : i32
    %c0_i32_1 = arith.constant 0 : i32
    return %arg0, %c0_i32, %c0_i32_0 : i32, i32, i32
  }
}

</mosaic_0001>

<llo_original>
// kernel: tpu_custom_call.1
$region0: #{tpu_custom_call.1}
  #allocation0 [shape = 'u32[]', space=smem, size = 0x4, offset = 0x4, fixed_abs, tag = 'smem constant byte address 0x4 - core index']
  #allocation1 [shape = 'u32[72,128]{1,0:T(1,128)}', space=vmem, size = 0x9000, scoped, tag = 'internal scratch']
  %s0 = inlined_call_operand.vmem [shape: f32[2,8,256], index: 0, kind: input, shape index: {}]
  %s1 = inlined_call_operand.vmem [shape: f32[16,8], index: 1, kind: input, shape index: {}]
  %s2 = inlined_call_operand.vmem [shape: f32[16,1], index: 2, kind: input, shape index: {}]
  %s3 = inlined_call_operand.vmem [shape: f32[32,8], index: 3, kind: input, shape index: {}]
  %s4 = inlined_call_operand.vmem [shape: f32[32,1], index: 4, kind: input, shape index: {}]
  %s5 = inlined_call_operand.vmem [shape: f32[32,32], index: 5, kind: input, shape index: {}]
  %s6 = inlined_call_operand.vmem [shape: f32[1,32], index: 6, kind: input, shape index: {}]
  %s7 = inlined_call_operand.vmem [shape: f32[8,32], index: 7, kind: input, shape index: {}]
  %s8 = inlined_call_operand.vmem [shape: f32[8,1], index: 8, kind: input, shape index: {}]
  %s9 = inlined_call_operand.vmem [shape: f32[8,1], index: 9, kind: input, shape index: {}]
  %s10 = inlined_call_operand.vmem [shape: f32[8,1], index: 10, kind: input, shape index: {}]
  %s11 = inlined_call_operand.vmem [shape: f32[8,1], index: 11, kind: input, shape index: {}]
  %s12 = inlined_call_operand.hbm [shape: f32[2,8,256], index: 12, kind: output, shape index: {}]
  %s13 = sld [smem:[#allocation0]]
  $region81: #{tpu_custom_call.1} parent=0
    _
  %s15 = ssub.s32 1, %s13
  %s16 = scalar_select 0, %s15, %s13
  $region1: #{tpu_custom_call.1} parent=0
    #allocation2 [shape = 'u8[16384]{0}', space=vmem, size = 0x4000, scoped, tag = 'output window, operand 0']
    #allocation3 [shape = 's32[2]{0}', space=sflag, size = 0x8, scoped, tag = 'scoped memory for tpu_custom_call.1']
    %17 = vsyncpa [#allocation3], 0
    %s18 = scalar_lea.sflag [#allocation3], 1
    %19 = vsyncpa %s18, 0
    loop: start=0, step=1, limit=4
    $region2: #{tpu_custom_call.1} parent=1 // loop_pre_header
      _
    $region3: #{tpu_custom_call.1} parent=1 // loop_header
      %s21 = sphi 0, %s25
      %p22 = scmp.ge.s32.totalorder %s21, 4
      %s31 = sphi 0, %s33
      %s34 = sphi 0, %s31
      %s35 = sphi 0, %s34
      %s51 = sphi 0, %s35
      %s55 = sphi 0, %s55
      %s57 = sphi 0, %s55
      %s58 = sphi 0, %s57
      %s72 = sphi 0, %s58
      %s76 = sphi 0, %s76
      %s78 = sphi 0, %s76
      %s79 = sphi 0, %s78
      %s93 = sphi 0, %s79
      %s97 = sphi 0, %s97
      %s99 = sphi 0, %s97
      %s100 = sphi 0, %s99
      %s114 = sphi 0, %s100
      %s118 = sphi 0, %s118
      %s120 = sphi 0, %s118
      %s121 = sphi 0, %s120
      %s135 = sphi 0, %s121
      %s139 = sphi 0, %s139
      %s141 = sphi 0, %s139
      %s142 = sphi 0, %s141
      %s156 = sphi 0, %s142
      %s160 = sphi 0, %s160
      %s162 = sphi 0, %s160
      %s163 = sphi 0, %s162
      %s177 = sphi 0, %s163
      %s181 = sphi 0, %s181
      %s183 = sphi 0, %s181
      %s184 = sphi 0, %s183
      %s198 = sphi 0, %s184
      %s202 = sphi 0, %s202
      %s204 = sphi 0, %s202
      %s205 = sphi 0, %s204
      %s219 = sphi 0, %s205
      %s223 = sphi 0, %s223
      %s225 = sphi 0, %s223
      %s226 = sphi 0, %s225
      %s240 = sphi 0, %s226
      %s244 = sphi 0, %s244
      %s246 = sphi 0, %s244
      %s247 = sphi 0, %s246
      %s261 = sphi 0, %s247
      %s265 = sphi 0, %s265
      %s267 = sphi 0, %s265
      %s268 = sphi 0, %s267
      %s282 = sphi 0, %s268
      %s288 = sphi 0, %s290
      %s291 = sphi 0, %s288
      %s292 = sphi 0, %s291
      %s308 = sphi 0, %s292
    $region4: #{tpu_custom_call.1} parent=1 // loop_header_branch
      %24 = sbr.rel (%p22) target = $region8
    $region5: #{tpu_custom_call.1} parent=1 // loop_body
      %s26 = ssub.s32 %s21, 1
      %s27 = ssub.s32 %s21, 2
      %s28 = sadd.s32 %s21, 1
      %s29 = ssub.s32 %s21, %s28
      %p30 = scmp.eq.s32.totalorder %s29, 0
      %s32 = sadd.s32 %s31, 1
      %s33 = scalar_select %p30, %s31, %s32
      %p36 = pneg %p30
      %p37 = scmp.eq.s32.totalorder %s21, 1
      %p38 = por %p36, %p37
      %p39 = scmp.ne.s32.totalorder %s31, %s34
      %p40 = scmp.eq.s32.totalorder %s21, 0
      %p41 = por %p39, %p40
      %p42 = scmp.ne.s32.totalorder %s31, %s34
      %p43 = scmp.eq.s32.totalorder %s26, 1
      %p44 = por %p42, %p43
      %p45 = scmp.ne.s32.totalorder %s34, %s35
      %p46 = scmp.eq.s32.totalorder %s26, 0
      %p47 = por %p45, %p46
      %p48 = scmp.ne.s32.totalorder %s34, %s35
      %p49 = scmp.eq.s32.totalorder %s27, 1
      %p50 = por %p48, %p49
      %p52 = scmp.ne.s32.totalorder %s35, %s51
      %p53 = scmp.eq.s32.totalorder %s27, 0
      %p54 = por %p52, %p53
      %s56 = sadd.s32 %s55, 1
      %p59 = scmp.eq.s32.totalorder %s21, 1
      %p60 = scmp.ne.s32.totalorder %s55, %s57
      %p61 = scmp.eq.s32.totalorder %s21, 0
      %p62 = por %p60, %p61
      %p63 = scmp.ne.s32.totalorder %s55, %s57
      %p64 = scmp.eq.s32.totalorder %s26, 1
      %p65 = por %p63, %p64
      %p66 = scmp.ne.s32.totalorder %s57, %s58
      %p67 = scmp.eq.s32.totalorder %s26, 0
      %p68 = por %p66, %p67
      %p69 = scmp.ne.s32.totalorder %s57, %s58
      %p70 = scmp.eq.s32.totalorder %s27, 1
      %p71 = por %p69, %p70
      %p73 = scmp.ne.s32.totalorder %s58, %s72
      %p74 = scmp.eq.s32.totalorder %s27, 0
      %p75 = por %p73, %p74
      %s77 = sadd.s32 %s76, 1
      %p80 = scmp.eq.s32.totalorder %s21, 1
      %p81 = scmp.ne.s32.totalorder %s76, %s78
      %p82 = scmp.eq.s32.totalorder %s21, 0
      %p83 = por %p81, %p82
      %p84 = scmp.ne.s32.totalorder %s76, %s78
      %p85 = scmp.eq.s32.totalorder %s26, 1
      %p86 = por %p84, %p85
      %p87 = scmp.ne.s32.totalorder %s78, %s79
      %p88 = scmp.eq.s32.totalorder %s26, 0
      %p89 = por %p87, %p88
      %p90 = scmp.ne.s32.totalorder %s78, %s79
      %p91 = scmp.eq.s32.totalorder %s27, 1
      %p92 = por %p90, %p91
      %p94 = scmp.ne.s32.totalorder %s79, %s93
      %p95 = scmp.eq.s32.totalorder %s27, 0
      %p96 = por %p94, %p95
      %s98 = sadd.s32 %s97, 1
      %p101 = scmp.eq.s32.totalorder %s21, 1
      %p102 = scmp.ne.s32.totalorder %s97, %s99
      %p103 = scmp.eq.s32.totalorder %s21, 0
      %p104 = por %p102, %p103
      %p105 = scmp.ne.s32.totalorder %s97, %s99
      %p106 = scmp.eq.s32.totalorder %s26, 1
      %p107 = por %p105, %p106
      %p108 = scmp.ne.s32.totalorder %s99, %s100
      %p109 = scmp.eq.s32.totalorder %s26, 0
      %p110 = por %p108, %p109
      %p111 = scmp.ne.s32.totalorder %s99, %s100
      %p112 = scmp.eq.s32.totalorder %s27, 1
      %p113 = por %p111, %p112
      %p115 = scmp.ne.s32.totalorder %s100, %s114
      %p116 = scmp.eq.s32.totalorder %s27, 0
      %p117 = por %p115, %p116
      %s119 = sadd.s32 %s118, 1
      %p122 = scmp.eq.s32.totalorder %s21, 1
      %p123 = scmp.ne.s32.totalorder %s118, %s120
      %p124 = scmp.eq.s32.totalorder %s21, 0
      %p125 = por %p123, %p124
      %p126 = scmp.ne.s32.totalorder %s118, %s120
      %p127 = scmp.eq.s32.totalorder %s26, 1
      %p128 = por %p126, %p127
      %p129 = scmp.ne.s32.totalorder %s120, %s121
      %p130 = scmp.eq.s32.totalorder %s26, 0
      %p131 = por %p129, %p130
      %p132 = scmp.ne.s32.totalorder %s120, %s121
      %p133 = scmp.eq.s32.totalorder %s27, 1
      %p134 = por %p132, %p133
      %p136 = scmp.ne.s32.totalorder %s121, %s135
      %p137 = scmp.eq.s32.totalorder %s27, 0
      %p138 = por %p136, %p137
      %s140 = sadd.s32 %s139, 1
      %p143 = scmp.eq.s32.totalorder %s21, 1
      %p144 = scmp.ne.s32.totalorder %s139, %s141
      %p145 = scmp.eq.s32.totalorder %s21, 0
      %p146 = por %p144, %p145
      %p147 = scmp.ne.s32.totalorder %s139, %s141
      %p148 = scmp.eq.s32.totalorder %s26, 1
      %p149 = por %p147, %p148
      %p150 = scmp.ne.s32.totalorder %s141, %s142
      %p151 = scmp.eq.s32.totalorder %s26, 0
      %p152 = por %p150, %p151
      %p153 = scmp.ne.s32.totalorder %s141, %s142
      %p154 = scmp.eq.s32.totalorder %s27, 1
      %p155 = por %p153, %p154
      %p157 = scmp.ne.s32.totalorder %s142, %s156
      %p158 = scmp.eq.s32.totalorder %s27, 0
      %p159 = por %p157, %p158
      %s161 = sadd.s32 %s160, 1
      %p164 = scmp.eq.s32.totalorder %s21, 1
      %p165 = scmp.ne.s32.totalorder %s160, %s162
      %p166 = scmp.eq.s32.totalorder %s21, 0
      %p167 = por %p165, %p166
      %p168 = scmp.ne.s32.totalorder %s160, %s162
      %p169 = scmp.eq.s32.totalorder %s26, 1
      %p170 = por %p168, %p169
      %p171 = scmp.ne.s32.totalorder %s162, %s163
      %p172 = scmp.eq.s32.totalorder %s26, 0
      %p173 = por %p171, %p172
      %p174 = scmp.ne.s32.totalorder %s162, %s163
      %p175 = scmp.eq.s32.totalorder %s27, 1
      %p176 = por %p174, %p175
      %p178 = scmp.ne.s32.totalorder %s163, %s177
      %p179 = scmp.eq.s32.totalorder %s27, 0
      %p180 = por %p178, %p179
      %s182 = sadd.s32 %s181, 1
      %p185 = scmp.eq.s32.totalorder %s21, 1
      %p186 = scmp.ne.s32.totalorder %s181, %s183
      %p187 = scmp.eq.s32.totalorder %s21, 0
      %p188 = por %p186, %p187
      %p189 = scmp.ne.s32.totalorder %s181, %s183
      %p190 = scmp.eq.s32.totalorder %s26, 1
      %p191 = por %p189, %p190
      %p192 = scmp.ne.s32.totalorder %s183, %s184
      %p193 = scmp.eq.s32.totalorder %s26, 0
      %p194 = por %p192, %p193
      %p195 = scmp.ne.s32.totalorder %s183, %s184
      %p196 = scmp.eq.s32.totalorder %s27, 1
      %p197 = por %p195, %p196
      %p199 = scmp.ne.s32.totalorder %s184, %s198
      %p200 = scmp.eq.s32.totalorder %s27, 0
      %p201 = por %p199, %p200
      %s203 = sadd.s32 %s202, 1
      %p206 = scmp.eq.s32.totalorder %s21, 1
      %p207 = scmp.ne.s32.totalorder %s202, %s204
      %p208 = scmp.eq.s32.totalorder %s21, 0
      %p209 = por %p207, %p208
      %p210 = scmp.ne.s32.totalorder %s202, %s204
      %p211 = scmp.eq.s32.totalorder %s26, 1
      %p212 = por %p210, %p211
      %p213 = scmp.ne.s32.totalorder %s204, %s205
      %p214 = scmp.eq.s32.totalorder %s26, 0
      %p215 = por %p213, %p214
      %p216 = scmp.ne.s32.totalorder %s204, %s205
      %p217 = scmp.eq.s32.totalorder %s27, 1
      %p218 = por %p216, %p217
      %p220 = scmp.ne.s32.totalorder %s205, %s219
      %p221 = scmp.eq.s32.totalorder %s27, 0
      %p222 = por %p220, %p221
      %s224 = sadd.s32 %s223, 1
      %p227 = scmp.eq.s32.totalorder %s21, 1
      %p228 = scmp.ne.s32.totalorder %s223, %s225
      %p229 = scmp.eq.s32.totalorder %s21, 0
      %p230 = por %p228, %p229
      %p231 = scmp.ne.s32.totalorder %s223, %s225
      %p232 = scmp.eq.s32.totalorder %s26, 1
      %p233 = por %p231, %p232
      %p234 = scmp.ne.s32.totalorder %s225, %s226
      %p235 = scmp.eq.s32.totalorder %s26, 0
      %p236 = por %p234, %p235
      %p237 = scmp.ne.s32.totalorder %s225, %s226
      %p238 = scmp.eq.s32.totalorder %s27, 1
      %p239 = por %p237, %p238
      %p241 = scmp.ne.s32.totalorder %s226, %s240
      %p242 = scmp.eq.s32.totalorder %s27, 0
      %p243 = por %p241, %p242
      %s245 = sadd.s32 %s244, 1
      %p248 = scmp.eq.s32.totalorder %s21, 1
      %p249 = scmp.ne.s32.totalorder %s244, %s246
      %p250 = scmp.eq.s32.totalorder %s21, 0
      %p251 = por %p249, %p250
      %p252 = scmp.ne.s32.totalorder %s244, %s246
      %p253 = scmp.eq.s32.totalorder %s26, 1
      %p254 = por %p252, %p253
      %p255 = scmp.ne.s32.totalorder %s246, %s247
      %p256 = scmp.eq.s32.totalorder %s26, 0
      %p257 = por %p255, %p256
      %p258 = scmp.ne.s32.totalorder %s246, %s247
      %p259 = scmp.eq.s32.totalorder %s27, 1
      %p260 = por %p258, %p259
      %p262 = scmp.ne.s32.totalorder %s247, %s261
      %p263 = scmp.eq.s32.totalorder %s27, 0
      %p264 = por %p262, %p263
      %s266 = sadd.s32 %s265, 1
      %p269 = scmp.eq.s32.totalorder %s21, 1
      %p270 = scmp.ne.s32.totalorder %s265, %s267
      %p271 = scmp.eq.s32.totalorder %s21, 0
      %p272 = por %p270, %p271
      %p273 = scmp.ne.s32.totalorder %s265, %s267
      %p274 = scmp.eq.s32.totalorder %s26, 1
      %p275 = por %p273, %p274
      %p276 = scmp.ne.s32.totalorder %s267, %s268
      %p277 = scmp.eq.s32.totalorder %s26, 0
      %p278 = por %p276, %p277
      %p279 = scmp.ne.s32.totalorder %s267, %s268
      %p280 = scmp.eq.s32.totalorder %s27, 1
      %p281 = por %p279, %p280
      %p283 = scmp.ne.s32.totalorder %s268, %s282
      %p284 = scmp.eq.s32.totalorder %s27, 0
      %p285 = por %p283, %p284
      %s286 = ssub.s32 %s21, %s28
      %p287 = scmp.eq.s32.totalorder %s286, 0
      %s289 = sadd.s32 %s288, 1
      %s290 = scalar_select %p287, %s288, %s289
      %p293 = pneg %p287
      %p294 = scmp.eq.s32.totalorder %s21, 1
      %p295 = por %p293, %p294
      %p296 = scmp.ne.s32.totalorder %s288, %s291
      %p297 = scmp.eq.s32.totalorder %s21, 0
      %p298 = por %p296, %p297
      %p299 = scmp.ne.s32.totalorder %s288, %s291
      %p300 = scmp.eq.s32.totalorder %s26, 1
      %p301 = por %p299, %p300
      %p302 = scmp.ne.s32.totalorder %s291, %s292
      %p303 = scmp.eq.s32.totalorder %s26, 0
      %p304 = por %p302, %p303
      %p305 = scmp.ne.s32.totalorder %s291, %s292
      %p306 = scmp.eq.s32.totalorder %s27, 1
      %p307 = por %p305, %p306
      %p309 = scmp.ne.s32.totalorder %s292, %s308
      %p310 = scmp.eq.s32.totalorder %s27, 0
      %p311 = por %p309, %p310
      %p312 = scmp.le.s32.totalorder 1, %s21
      %p313 = scmp.lt.s32.totalorder %s21, 3
      %p314 = pnand %p312, %p313
      %p315 = pneg %p314
      // Predicated region
      $region9: #{tpu_custom_call.1} parent=5 // pred_check
        _
      $region10: #{tpu_custom_call.1} parent=5 // pred_check_branch
        %317 = sbr.rel (%p314) target = $region12
      $region11: #{tpu_custom_call.1} parent=5 // pred_region
        %s318 = ssub.s32 %s21, 1
        // Predicated region
        $region13: #{tpu_custom_call.1} parent=11 // pred_check
          %p319 = pneg %p68
        $region14: #{tpu_custom_call.1} parent=11 // pred_check_branch
          %321 = sbr.rel (%p319) target = $region16
        $region15: #{tpu_custom_call.1} parent=11 // pred_region
          _
        $region16: #{tpu_custom_call.1} parent=11 // pred_fallthru
          _
        // Predicated region
        $region17: #{tpu_custom_call.1} parent=11 // pred_check
          %p322 = pneg %p89
        $region18: #{tpu_custom_call.1} parent=11 // pred_check_branch
          %324 = sbr.rel (%p322) target = $region20
        $region19: #{tpu_custom_call.1} parent=11 // pred_region
          _
        $region20: #{tpu_custom_call.1} parent=11 // pred_fallthru
          _
        // Predicated region
        $region21: #{tpu_custom_call.1} parent=11 // pred_check
          %p325 = pneg %p110
        $region22: #{tpu_custom_call.1} parent=11 // pred_check_branch
          %327 = sbr.rel (%p325) target = $region24
        $region23: #{tpu_custom_call.1} parent=11 // pred_region
          _
        $region24: #{tpu_custom_call.1} parent=11 // pred_fallthru
          _
        // Predicated region
        $region25: #{tpu_custom_call.1} parent=11 // pred_check
          %p328 = pneg %p131
        $region26: #{tpu_custom_call.1} parent=11 // pred_check_branch
          %330 = sbr.rel (%p328) target = $region28
        $region27: #{tpu_custom_call.1} parent=11 // pred_region
          _
        $region28: #{tpu_custom_call.1} parent=11 // pred_fallthru
          _
        // Predicated region
        $region29: #{tpu_custom_call.1} parent=11 // pred_check
          %p331 = pneg %p152
        $region30: #{tpu_custom_call.1} parent=11 // pred_check_branch
          %333 = sbr.rel (%p331) target = $region32
        $region31: #{tpu_custom_call.1} parent=11 // pred_region
          _
        $region32: #{tpu_custom_call.1} parent=11 // pred_fallthru
          _
        // Predicated region
        $region33: #{tpu_custom_call.1} parent=11 // pred_check
          %p334 = pneg %p173
        $region34: #{tpu_custom_call.1} parent=11 // pred_check_branch
          %336 = sbr.rel (%p334) target = $region36
        $region35: #{tpu_custom_call.1} parent=11 // pred_region
          _
        $region36: #{tpu_custom_call.1} parent=11 // pred_fallthru
          _
        // Predicated region
        $region37: #{tpu_custom_call.1} parent=11 // pred_check
          %p337 = pneg %p194
        $region38: #{tpu_custom_call.1} parent=11 // pred_check_branch
          %339 = sbr.rel (%p337) target = $region40
        $region39: #{tpu_custom_call.1} parent=11 // pred_region
          _
        $region40: #{tpu_custom_call.1} parent=11 // pred_fallthru
          _
        // Predicated region
        $region41: #{tpu_custom_call.1} parent=11 // pred_check
          %p340 = pneg %p215
        $region42: #{tpu_custom_call.1} parent=11 // pred_check_branch
          %342 = sbr.rel (%p340) target = $region44
        $region43: #{tpu_custom_call.1} parent=11 // pred_region
          _
        $region44: #{tpu_custom_call.1} parent=11 // pred_fallthru
          _
        // Predicated region
        $region45: #{tpu_custom_call.1} parent=11 // pred_check
          %p343 = pneg %p236
        $region46: #{tpu_custom_call.1} parent=11 // pred_check_branch
          %345 = sbr.rel (%p343) target = $region48
        $region47: #{tpu_custom_call.1} parent=11 // pred_region
          _
        $region48: #{tpu_custom_call.1} parent=11 // pred_fallthru
          _
        // Predicated region
        $region49: #{tpu_custom_call.1} parent=11 // pred_check
          %p346 = pneg %p257
        $region50: #{tpu_custom_call.1} parent=11 // pred_check_branch
          %348 = sbr.rel (%p346) target = $region52
        $region51: #{tpu_custom_call.1} parent=11 // pred_region
          _
        $region52: #{tpu_custom_call.1} parent=11 // pred_fallthru
          _
        // Predicated region
        $region53: #{tpu_custom_call.1} parent=11 // pred_check
          %p349 = pneg %p278
        $region54: #{tpu_custom_call.1} parent=11 // pred_check_branch
          %351 = sbr.rel (%p349) target = $region56
        $region55: #{tpu_custom_call.1} parent=11 // pred_region
          _
        $region56: #{tpu_custom_call.1} parent=11 // pred_fallthru
          _
      $region12: #{tpu_custom_call.1} parent=5 // pred_fallthru
        _
      %p352 = scmp.lt.s32.totalorder %s21, 2
      // Predicated region
      $region57: #{tpu_custom_call.1} parent=5 // pred_check
        %p353 = pneg %p352
      $region58: #{tpu_custom_call.1} parent=5 // pred_check_branch
        %355 = sbr.rel (%p353) target = $region60
      $region59: #{tpu_custom_call.1} parent=5 // pred_region
        // Predicated region
        $region61: #{tpu_custom_call.1} parent=59 // pred_check
          %p356 = pneg %p41
        $region62: #{tpu_custom_call.1} parent=59 // pred_check_branch
          %358 = sbr.rel (%p356) target = $region64
        $region63: #{tpu_custom_call.1} parent=59 // pred_region
          %p359 = scmp.lt.s32.totalorder %s21, 1
          %s360 = scalar_select %p359, %s21, 1
          %s361 = smul.addr %s360, 2
          %s362 = smul.addr %s361, 8
          %s363 = scalar_lea.vmem %s0, %s362
        $region64: #{tpu_custom_call.1} parent=59 // pred_fallthru
          _
      $region60: #{tpu_custom_call.1} parent=5 // pred_fallthru
        _
      %p364 = scmp.le.s32.totalorder 1, %s21
      %p365 = scmp.lt.s32.totalorder %s21, 3
      %p366 = pnand %p364, %p365
      %p367 = pneg %p366
      // Predicated region
      $region65: #{tpu_custom_call.1} parent=5 // pred_check
        _
      $region66: #{tpu_custom_call.1} parent=5 // pred_check_branch
        %369 = sbr.rel (%p366) target = $region68
      $region67: #{tpu_custom_call.1} parent=5 // pred_region
        %s370 = ssub.s32 %s21, 1
        %p371 = scmp.lt.s32.totalorder %s26, 1
        %s372 = scalar_select %p371, %s26, 1
        %s373 = smul.addr %s372, 2
        %s374 = smul.addr %s373, 8
        %s375 = scalar_lea.vmem %s0, %s374
        %p376 = pneg %p47
        %p377 = pneg %p44
        %p378 = pneg %p68
        %p379 = pneg %p65
        %p380 = pneg %p89
        %p381 = pneg %p86
        %p382 = pneg %p110
        %p383 = pneg %p107
        %p384 = pneg %p131
        %p385 = pneg %p128
        %p386 = pneg %p152
        %p387 = pneg %p149
        %p388 = pneg %p173
        %p389 = pneg %p170
        %p390 = pneg %p194
        %p391 = pneg %p191
        %p392 = pneg %p215
        %p393 = pneg %p212
        %p394 = pneg %p236
        %p395 = pneg %p233
        %p396 = pneg %p257
        %p397 = pneg %p254
        %p398 = pneg %p278
        %p399 = pneg %p275
        %p400 = pneg %p304
        %p401 = pneg %p301
        %s402 = sand.u32 %s291, 1
        %s403 = scalar_lea.sflag [#allocation3], %s402
        %s404 = sand.u32 %s291, 1
        %s405 = smul.addr %s404, 16
        %s406 = scalar_lea.vmem [#allocation2], %s405
        %p407 = scmp.lt.s32.totalorder %s26, 1
        %s408 = scalar_select %p407, %s26, 1
        %s409 = smul.addr %s408, 2
        %s410 = smul.addr %s409, 8
        %s411 = scalar_lea.vmem %s0, %s410
        %v412 = vld [vmem:[%s411] sm:$0xff]
        %v413 = vld [vmem:[%s411 + $0x8] sm:$0xff]
        %v414 = vld [vmem:[%s1] sm:$0xff]
        %v415 = vld [vmem:[%s1 + $0x8] sm:$0xff]
        %v416 = vld [vmem:[%s2] sm:$0xff]
        %v417 = vld [vmem:[%s2 + $0x8] sm:$0xff]
        %419 = vset.pattern.permute.xlu0 0
        %420 = vperm.xlu0 %419, %v416
        %v421 = vpop.permute.xlu0 %420
        %424 = vset.pattern.permute.xlu0 0
        %425 = vperm.xlu0 %424, %v417
        %v426 = vpop.permute.xlu0 %425
        %vm428 = vcmask 64512
        %v430 = vsel %vm428, %v414, 0
        %v433 = vsel %vm428, %v415, 0
        %435 = vmatpush.msra.mxu0 0.0
        %436 = vmatpush.msra.mxu0 0.0
        %437 = vmatpush.msra.mxu0 0.0
        %438 = vmatpush.msra.mxu0 0.0
        %439 = vmatpush.msra.mxu0 0.0
        %440 = vmatpush.msra.mxu0 0.0
        %441 = vmatpush.msra.mxu0 0.0
        %442 = vmatpush.msra.mxu0 0.0
        %443 = vmatpush.msra.mxu0 0.0
        %444 = vmatpush.msra.mxu0 0.0
        %445 = vmatpush.msra.mxu0 0.0
        %446 = vmatpush.msra.mxu0 0.0
        %447 = vmatpush.msra.mxu0 0.0
        %448 = vmatpush.msra.mxu0 0.0
        %449 = vmatpush.msra.mxu0 0.0
        %450 = vmatpush.msra.mxu0 %v412
        %451 = vmatmul.f32.gmra.mxu0 %v430
        %v452 = vpop.f32.mrf.mxu0
        %v453 = vadd.f32 %v421, %v452
        %454 = vmatmul.f32.gmra.mxu0 %v433
        %v455 = vpop.f32.mrf.mxu0
        %v456 = vadd.f32 %v426, %v455
        %457 = vdwg.mxu0
        %458 = vmatpush.msra.mxu0 0.0
        %459 = vmatpush.msra.mxu0 0.0
        %460 = vmatpush.msra.mxu0 0.0
        %461 = vmatpush.msra.mxu0 0.0
        %462 = vmatpush.msra.mxu0 0.0
        %463 = vmatpush.msra.mxu0 0.0
        %464 = vmatpush.msra.mxu0 0.0
        %465 = vmatpush.msra.mxu0 0.0
        %466 = vmatpush.msra.mxu0 0.0
        %467 = vmatpush.msra.mxu0 0.0
        %468 = vmatpush.msra.mxu0 0.0
        %469 = vmatpush.msra.mxu0 0.0
        %470 = vmatpush.msra.mxu0 0.0
        %471 = vmatpush.msra.mxu0 0.0
        %472 = vmatpush.msra.mxu0 0.0
        %473 = vmatpush.msra.mxu0 %v413
        %474 = vmatmul.f32.gmra.mxu0 %v430
        %v475 = vpop.f32.mrf.mxu0
        %v476 = vadd.f32 %v421, %v475
        %477 = vmatmul.f32.gmra.mxu0 %v433
        %v478 = vpop.f32.mrf.mxu0
        %v479 = vadd.f32 %v426, %v478
        %480 = vdwg.mxu0
        %v481 = vld [vmem:[%s3] sm:$0xff]
        %v482 = vld [vmem:[%s3 + $0x8] sm:$0xff]
        %v483 = vld [vmem:[%s3 + $0x10] sm:$0xff]
        %v484 = vld [vmem:[%s3 + $0x18] sm:$0xff]
        %v485 = vld [vmem:[%s4] sm:$0xff]
        %v486 = vld [vmem:[%s4 + $0x8] sm:$0xff]
        %v487 = vld [vmem:[%s4 + $0x10] sm:$0xff]
        %v488 = vld [vmem:[%s4 + $0x18] sm:$0xff]
        %490 = vset.pattern.permute.xlu0 0
        %491 = vperm.xlu0 %490, %v485
        %v492 = vpop.permute.xlu0 %491
        %495 = vset.pattern.permute.xlu0 0
        %496 = vperm.xlu0 %495, %v486
        %v497 = vpop.permute.xlu0 %496
        %500 = vset.pattern.permute.xlu0 0
        %501 = vperm.xlu0 %500, %v487
        %v502 = vpop.permute.xlu0 %501
        %505 = vset.pattern.permute.xlu0 0
        %506 = vperm.xlu0 %505, %v488
        %v507 = vpop.permute.xlu0 %506
        %v510 = vsel %vm428, %v481, 0
        %v513 = vsel %vm428, %v482, 0
        %v516 = vsel %vm428, %v483, 0
        %v519 = vsel %vm428, %v484, 0
        %521 = vmatpush.msra.mxu0 0.0
        %522 = vmatpush.msra.mxu0 0.0
        %523 = vmatpush.msra.mxu0 0.0
        %524 = vmatpush.msra.mxu0 0.0
        %525 = vmatpush.msra.mxu0 0.0
        %526 = vmatpush.msra.mxu0 0.0
        %527 = vmatpush.msra.mxu0 0.0
        %528 = vmatpush.msra.mxu0 0.0
        %529 = vmatpush.msra.mxu0 0.0
        %530 = vmatpush.msra.mxu0 0.0
        %531 = vmatpush.msra.mxu0 0.0
        %532 = vmatpush.msra.mxu0 0.0
        %533 = vmatpush.msra.mxu0 0.0
        %534 = vmatpush.msra.mxu0 0.0
        %535 = vmatpush.msra.mxu0 0.0
        %536 = vmatpush.msra.mxu0 %v412
        %537 = vmatmul.f32.gmra.mxu0 %v510
        %v538 = vpop.f32.mrf.mxu0
        %v539 = vadd.f32 %v492, %v538
        %540 = vmatmul.f32.gmra.mxu0 %v513
        %v541 = vpop.f32.mrf.mxu0
        %v542 = vadd.f32 %v497, %v541
        %543 = vmatmul.f32.gmra.mxu0 %v516
        %v544 = vpop.f32.mrf.mxu0
        %v545 = vadd.f32 %v502, %v544
        %546 = vmatmul.f32.gmra.mxu0 %v519
        %v547 = vpop.f32.mrf.mxu0
        %v548 = vadd.f32 %v507, %v547
        %549 = vdwg.mxu0
        %550 = vmatpush.msra.mxu0 0.0
        %551 = vmatpush.msra.mxu0 0.0
        %552 = vmatpush.msra.mxu0 0.0
        %553 = vmatpush.msra.mxu0 0.0
        %554 = vmatpush.msra.mxu0 0.0
        %555 = vmatpush.msra.mxu0 0.0
        %556 = vmatpush.msra.mxu0 0.0
        %557 = vmatpush.msra.mxu0 0.0
        %558 = vmatpush.msra.mxu0 0.0
        %559 = vmatpush.msra.mxu0 0.0
        %560 = vmatpush.msra.mxu0 0.0
        %561 = vmatpush.msra.mxu0 0.0
        %562 = vmatpush.msra.mxu0 0.0
        %563 = vmatpush.msra.mxu0 0.0
        %564 = vmatpush.msra.mxu0 0.0
        %565 = vmatpush.msra.mxu0 %v413
        %566 = vmatmul.f32.gmra.mxu0 %v510
        %v567 = vpop.f32.mrf.mxu0
        %v568 = vadd.f32 %v492, %v567
        %569 = vmatmul.f32.gmra.mxu0 %v513
        %v570 = vpop.f32.mrf.mxu0
        %v571 = vadd.f32 %v497, %v570
        %572 = vmatmul.f32.gmra.mxu0 %v516
        %v573 = vpop.f32.mrf.mxu0
        %v574 = vadd.f32 %v502, %v573
        %575 = vmatmul.f32.gmra.mxu0 %v519
        %v576 = vpop.f32.mrf.mxu0
        %v577 = vadd.f32 %v507, %v576
        %578 = vdwg.mxu0
        %579 = vmatpush.xpose.msra.mxu0 0.0
        %580 = vmatpush.xpose.msra.mxu0 0.0
        %581 = vmatpush.xpose.msra.mxu0 0.0
        %582 = vmatpush.xpose.msra.mxu0 0.0
        %583 = vmatpush.xpose.msra.mxu0 0.0
        %584 = vmatpush.xpose.msra.mxu0 0.0
        %585 = vmatpush.xpose.msra.mxu0 0.0
        %586 = vmatpush.xpose.msra.mxu0 0.0
        %587 = vmatpush.xpose.msra.mxu0 0.0
        %588 = vmatpush.xpose.msra.mxu0 0.0
        %589 = vmatpush.xpose.msra.mxu0 0.0
        %590 = vmatpush.xpose.msra.mxu0 0.0
        %591 = vmatpush.xpose.msra.mxu0 %v548
        %592 = vmatpush.xpose.msra.mxu0 %v545
        %593 = vmatpush.xpose.msra.mxu0 %v542
        %594 = vmatpush.xpose.msra.mxu0 %v539
        %595 = vmatmul.f32.gmra.mxu0 %v453
        %v596 = vpop.f32.mrf.mxu0
        %v597 = vadd.f32 0.0, %v596
        %598 = vmatmul.f32.gmra.mxu0 %v456
        %v599 = vpop.f32.mrf.mxu0
        %v600 = vadd.f32 0.0, %v599
        %601 = vdwg.mxu0
        %602 = vmatpush.xpose.msra.mxu0 0.0
        %603 = vmatpush.xpose.msra.mxu0 0.0
        %604 = vmatpush.xpose.msra.mxu0 0.0
        %605 = vmatpush.xpose.msra.mxu0 0.0
        %606 = vmatpush.xpose.msra.mxu0 0.0
        %607 = vmatpush.xpose.msra.mxu0 0.0
        %608 = vmatpush.xpose.msra.mxu0 0.0
        %609 = vmatpush.xpose.msra.mxu0 0.0
        %610 = vmatpush.xpose.msra.mxu0 0.0
        %611 = vmatpush.xpose.msra.mxu0 0.0
        %612 = vmatpush.xpose.msra.mxu0 0.0
        %613 = vmatpush.xpose.msra.mxu0 0.0
        %614 = vmatpush.xpose.msra.mxu0 %v577
        %615 = vmatpush.xpose.msra.mxu0 %v574
        %616 = vmatpush.xpose.msra.mxu0 %v571
        %617 = vmatpush.xpose.msra.mxu0 %v568
        %618 = vmatmul.f32.gmra.mxu0 %v476
        %v619 = vpop.f32.mrf.mxu0
        %v620 = vadd.f32 %v597, %v619
        %621 = vmatmul.f32.gmra.mxu0 %v479
        %v622 = vpop.f32.mrf.mxu0
        %v623 = vadd.f32 %v600, %v622
        %624 = vdwg.mxu0
        %v625 = vmul.f32 %v620, 0.00390625
        %v626 = vmul.f32 %v623, 0.00390625
        %v627 = vmul.f32 %v625, %v625
        %v628 = vmul.f32 %v626, %v626
        %vm629 = vcmask 261120
        %v630 = vsel %vm629, %v627, 0.0
        %631 = vadd.xlane.f32.xlu0 %v630
        %v632 = vpop.xlane.xlu0 %631
        %v633 = vsel %vm629, %v628, 0.0
        %634 = vadd.xlane.f32.xlu0 %v633
        %v635 = vpop.xlane.xlu0 %634
        %v636 = vmax.f32 %v632, 1e-24
        %v637 = vmax.f32 %v635, 1e-24
        %v638 = vrsqrt.pop %v636
        %v639 = vmul.f32 %v638, %v636
        %v640 = vmul.f32 %v639, %v638
        %v641 = vmul.f32 0.5, %v640
        %v642 = vsub.f32 1.5, %v641
        %v643 = vmul.f32 %v638, %v642
        %vm644 = vweird.f32 %v636
        %vm645 = vweird.f32 %v638
        %vm646 = vmor %vm644, %vm645
        %v647 = vsel %vm646, %v638, %v643
        %v648 = vrsqrt.pop %v637
        %v649 = vmul.f32 %v648, %v637
        %v650 = vmul.f32 %v649, %v648
        %v651 = vmul.f32 0.5, %v650
        %v652 = vsub.f32 1.5, %v651
        %v653 = vmul.f32 %v648, %v652
        %vm654 = vweird.f32 %v637
        %vm655 = vweird.f32 %v648
        %vm656 = vmor %vm654, %vm655
        %v657 = vsel %vm656, %v648, %v653
        %v658 = vmul.f32 %v625, %v647
        %v659 = vmul.f32 %v626, %v657
        %v661 = vsel %vm629, %v658, 0
        %v664 = vsel %vm629, %v659, 0
        %666 = vmatpush.xpose.msra.mxu0 0.0
        %667 = vmatpush.xpose.msra.mxu0 0.0
        %668 = vmatpush.xpose.msra.mxu0 0.0
        %669 = vmatpush.xpose.msra.mxu0 0.0
        %670 = vmatpush.xpose.msra.mxu0 0.0
        %671 = vmatpush.xpose.msra.mxu0 0.0
        %672 = vmatpush.xpose.msra.mxu0 0.0
        %673 = vmatpush.xpose.msra.mxu0 0.0
        %674 = vmatpush.xpose.msra.mxu0 0.0
        %675 = vmatpush.xpose.msra.mxu0 0.0
        %676 = vmatpush.xpose.msra.mxu0 0.0
        %677 = vmatpush.xpose.msra.mxu0 0.0
        %678 = vmatpush.xpose.msra.mxu0 0.0
        %679 = vmatpush.xpose.msra.mxu0 0.0
        %680 = vmatpush.xpose.msra.mxu0 %v664
        %681 = vmatpush.xpose.msra.mxu0 %v661
        %682 = vmatmul.f32.gmra.mxu0 %v661
        %v683 = vpop.f32.mrf.mxu0
        %v684 = vadd.f32 0.0, %v683
        %685 = vmatmul.f32.gmra.mxu0 %v664
        %v686 = vpop.f32.mrf.mxu0
        %v687 = vadd.f32 0.0, %v686
        %688 = vdwg.mxu0
        %vm689 = vcmask 130048
        %v690 = vsel %vm689, %v684, -inf
        %691 = vmax.xlane.f32.xlu0 %v690
        %v692 = vpop.xlane.xlu0 %691
        %v693 = vsel %vm689, %v687, -inf
        %694 = vmax.xlane.f32.xlu0 %v693
        %v695 = vpop.xlane.xlu0 %694
        %v696 = vsub.f32 %v684, %v692
        %v697 = vsub.f32 %v687, %v695
        %v698 = vmul.f32 %v696, 1.442695
        %v699 = vpow.pop %v698
        %v700 = vmul.f32 %v697, 1.442695
        %v701 = vpow.pop %v700
        %v702 = vsel %vm689, %v699, 0.0
        %703 = vadd.xlane.f32.xlu0 %v702
        %v704 = vpop.xlane.xlu0 %703
        %v705 = vsel %vm689, %v701, 0.0
        %706 = vadd.xlane.f32.xlu0 %v705
        %v707 = vpop.xlane.xlu0 %706
        %v708 = vrcp.pop %v704
        %v709 = vrcp.pop %v707
        %v710 = vmul.f32 %v699, %v708
        %v711 = vmul.f32 %v701, %v709
        %v712 = vld [vmem:[%s5] sm:$0xff]
        %v713 = vld [vmem:[%s5 + $0x8] sm:$0xff]
        %v714 = vld [vmem:[%s5 + $0x10] sm:$0xff]
        %v715 = vld [vmem:[%s5 + $0x18] sm:$0xff]
        %v717 = vsel %vm629, %v625, 0
        %v720 = vsel %vm629, %v626, 0
        %722 = vmatpush.msra.mxu0 0.0
        %723 = vmatpush.msra.mxu0 0.0
        %724 = vmatpush.msra.mxu0 0.0
        %725 = vmatpush.msra.mxu0 0.0
        %726 = vmatpush.msra.mxu0 0.0
        %727 = vmatpush.msra.mxu0 0.0
        %728 = vmatpush.msra.mxu0 0.0
        %729 = vmatpush.msra.mxu0 0.0
        %730 = vmatpush.msra.mxu0 0.0
        %731 = vmatpush.msra.mxu0 0.0
        %732 = vmatpush.msra.mxu0 0.0
        %733 = vmatpush.msra.mxu0 0.0
        %734 = vmatpush.msra.mxu0 %v715
        %735 = vmatpush.msra.mxu0 %v714
        %736 = vmatpush.msra.mxu0 %v713
        %737 = vmatpush.msra.mxu0 %v712
        %738 = vmatmul.f32.gmra.mxu0 %v717
        %v739 = vpop.f32.mrf.mxu0
        %v740 = vadd.f32 0.0, %v739
        %741 = vmatmul.f32.gmra.mxu0 %v720
        %v742 = vpop.f32.mrf.mxu0
        %v743 = vadd.f32 0.0, %v742
        %744 = vdwg.mxu0
        %v745 = vld [vmem:[%s6] sm:$0x1]
        %v747 = vperm.slane %v745, 0
        %v750 = vsel %vm689, %v710, 0
        %v753 = vsel %vm689, %v711, 0
        %755 = vmatpush.msra.mxu0 0.0
        %756 = vmatpush.msra.mxu0 0.0
        %757 = vmatpush.msra.mxu0 0.0
        %758 = vmatpush.msra.mxu0 0.0
        %759 = vmatpush.msra.mxu0 0.0
        %760 = vmatpush.msra.mxu0 0.0
        %761 = vmatpush.msra.mxu0 0.0
        %762 = vmatpush.msra.mxu0 0.0
        %763 = vmatpush.msra.mxu0 0.0
        %764 = vmatpush.msra.mxu0 0.0
        %765 = vmatpush.msra.mxu0 0.0
        %766 = vmatpush.msra.mxu0 0.0
        %767 = vmatpush.msra.mxu0 0.0
        %768 = vmatpush.msra.mxu0 0.0
        %769 = vmatpush.msra.mxu0 %v743
        %770 = vmatpush.msra.mxu0 %v740
        %771 = vmatmul.f32.gmra.mxu0 %v750
        %v772 = vpop.f32.mrf.mxu0
        %v773 = vadd.f32 %v747, %v772
        %774 = vmatmul.f32.gmra.mxu0 %v753
        %v775 = vpop.f32.mrf.mxu0
        %v776 = vadd.f32 %v747, %v775
        %777 = vdwg.mxu0
        %v778 = vadd.f32 %v773, %v625
        %v779 = vadd.f32 %v776, %v626
        %780 = vxpose.xlu0.b32.start [1/16] %v778, 128
        %781 = vxpose.xlu0.b32.cont [2/16] %v779, 128
        %782 = vxpose.xlu0.b32.cont [3/16] 0.0, 128
        %783 = vxpose.xlu0.b32.cont [4/16] 0.0, 128
        %784 = vxpose.xlu0.b32.cont [5/16] 0.0, 128
        %785 = vxpose.xlu0.b32.cont [6/16] 0.0, 128
        %786 = vxpose.xlu0.b32.cont [7/16] 0.0, 128
        %787 = vxpose.xlu0.b32.cont [8/16] 0.0, 128
        %788 = vxpose.xlu0.b32.cont [9/16] 0.0, 128
        %789 = vxpose.xlu0.b32.cont [10/16] 0.0, 128
        %790 = vxpose.xlu0.b32.cont [11/16] 0.0, 128
        %791 = vxpose.xlu0.b32.cont [12/16] 0.0, 128
        %792 = vxpose.xlu0.b32.cont [13/16] 0.0, 128
        %793 = vxpose.xlu0.b32.cont [14/16] 0.0, 128
        %794 = vxpose.xlu0.b32.cont [15/16] 0.0, 128
        %795 = vxpose.xlu0.b32.end [16/16] 0.0, 128
        %v796 = vpop.trf.xlu0
        %v797 = vpop.trf.xlu0
        %v798 = vpop.trf.xlu0
        %v799 = vpop.trf.xlu0
        %v800 = vpop.trf.xlu0
        %v801 = vpop.trf.xlu0
        %v802 = vpop.trf.xlu0
        %v803 = vpop.trf.xlu0
        %v804 = vpop.trf.xlu0
        %v805 = vpop.trf.xlu0
        %v806 = vpop.trf.xlu0
        %v807 = vpop.trf.xlu0
        %v808 = vpop.trf.xlu0
        %v809 = vpop.trf.xlu0
        %v810 = vpop.trf.xlu0
        %v811 = vpop.trf.xlu0
        %v813 = vsel %vm689, %v796, 0
        %v816 = vsel %vm689, %v797, 0
        %v819 = vsel %vm689, %v798, 0
        %v822 = vsel %vm689, %v799, 0
        %824 = vmatpush.msra.mxu0 0.0
        %825 = vmatpush.msra.mxu0 0.0
        %826 = vmatpush.msra.mxu0 0.0
        %827 = vmatpush.msra.mxu0 0.0
        %828 = vmatpush.msra.mxu0 0.0
        %829 = vmatpush.msra.mxu0 0.0
        %830 = vmatpush.msra.mxu0 0.0
        %831 = vmatpush.msra.mxu0 0.0
        %832 = vmatpush.msra.mxu0 0.0
        %833 = vmatpush.msra.mxu0 0.0
        %834 = vmatpush.msra.mxu0 0.0
        %835 = vmatpush.msra.mxu0 0.0
        %836 = vmatpush.msra.mxu0 0.0
        %837 = vmatpush.msra.mxu0 0.0
        %838 = vmatpush.msra.mxu0 %v456
        %839 = vmatpush.msra.mxu0 %v453
        %840 = vmatmul.f32.gmra.mxu0 %v813
        %v841 = vpop.f32.mrf.mxu0
        %v842 = vadd.f32 0.0, %v841
        %843 = vmatmul.f32.gmra.mxu0 %v816
        %v844 = vpop.f32.mrf.mxu0
        %v845 = vadd.f32 0.0, %v844
        %846 = vmatmul.f32.gmra.mxu0 %v819
        %v847 = vpop.f32.mrf.mxu0
        %v848 = vadd.f32 0.0, %v847
        %849 = vmatmul.f32.gmra.mxu0 %v822
        %v850 = vpop.f32.mrf.mxu0
        %v851 = vadd.f32 0.0, %v850
        %852 = vdwg.mxu0
        %853 = vmatpush.msra.mxu0 0.0
        %854 = vmatpush.msra.mxu0 0.0
        %855 = vmatpush.msra.mxu0 0.0
        %856 = vmatpush.msra.mxu0 0.0
        %857 = vmatpush.msra.mxu0 0.0
        %858 = vmatpush.msra.mxu0 0.0
        %859 = vmatpush.msra.mxu0 0.0
        %860 = vmatpush.msra.mxu0 0.0
        %861 = vmatpush.msra.mxu0 0.0
        %862 = vmatpush.msra.mxu0 0.0
        %863 = vmatpush.msra.mxu0 0.0
        %864 = vmatpush.msra.mxu0 0.0
        %865 = vmatpush.msra.mxu0 0.0
        %866 = vmatpush.msra.mxu0 0.0
        %867 = vmatpush.msra.mxu0 %v479
        %868 = vmatpush.msra.mxu0 %v476
        %869 = vmatmul.f32.gmra.mxu0 %v813
        %v870 = vpop.f32.mrf.mxu0
        %v871 = vadd.f32 0.0, %v870
        %872 = vmatmul.f32.gmra.mxu0 %v816
        %v873 = vpop.f32.mrf.mxu0
        %v874 = vadd.f32 0.0, %v873
        %875 = vmatmul.f32.gmra.mxu0 %v819
        %v876 = vpop.f32.mrf.mxu0
        %v877 = vadd.f32 0.0, %v876
        %878 = vmatmul.f32.gmra.mxu0 %v822
        %v879 = vpop.f32.mrf.mxu0
        %v880 = vadd.f32 0.0, %v879
        %881 = vdwg.mxu0
        %v882 = vld [vmem:[%s7] sm:$0xff]
        %v884 = vsel %vm629, %v882, 0
        %886 = vmatpush.msra.mxu0 0.0
        %887 = vmatpush.msra.mxu0 0.0
        %888 = vmatpush.msra.mxu0 0.0
        %889 = vmatpush.msra.mxu0 0.0
        %890 = vmatpush.msra.mxu0 0.0
        %891 = vmatpush.msra.mxu0 0.0
        %892 = vmatpush.msra.mxu0 0.0
        %893 = vmatpush.msra.mxu0 0.0
        %894 = vmatpush.msra.mxu0 0.0
        %895 = vmatpush.msra.mxu0 0.0
        %896 = vmatpush.msra.mxu0 0.0
        %897 = vmatpush.msra.mxu0 0.0
        %898 = vmatpush.msra.mxu0 %v851
        %899 = vmatpush.msra.mxu0 %v848
        %900 = vmatpush.msra.mxu0 %v845
        %901 = vmatpush.msra.mxu0 %v842
        %902 = vmatmul.f32.gmra.mxu0 %v884
        %v903 = vpop.f32.mrf.mxu0
        %v904 = vadd.f32 0.0, %v903
        %905 = vdwg.mxu0
        %906 = vmatpush.msra.mxu0 0.0
        %907 = vmatpush.msra.mxu0 0.0
        %908 = vmatpush.msra.mxu0 0.0
        %909 = vmatpush.msra.mxu0 0.0
        %910 = vmatpush.msra.mxu0 0.0
        %911 = vmatpush.msra.mxu0 0.0
        %912 = vmatpush.msra.mxu0 0.0
        %913 = vmatpush.msra.mxu0 0.0
        %914 = vmatpush.msra.mxu0 0.0
        %915 = vmatpush.msra.mxu0 0.0
        %916 = vmatpush.msra.mxu0 0.0
        %917 = vmatpush.msra.mxu0 0.0
        %918 = vmatpush.msra.mxu0 %v880
        %919 = vmatpush.msra.mxu0 %v877
        %920 = vmatpush.msra.mxu0 %v874
        %921 = vmatpush.msra.mxu0 %v871
        %922 = vmatmul.f32.gmra.mxu0 %v884
        %v923 = vpop.f32.mrf.mxu0
        %v924 = vadd.f32 0.0, %v923
        %925 = vdwg.mxu0
        %v926 = vld [vmem:[%s11] sm:$0xff]
        %v927 = vadd.f32 %v926, 1e-05
        %v928 = vrsqrt.pop %v927
        %v929 = vmul.f32 %v928, %v927
        %v930 = vmul.f32 %v929, %v928
        %v931 = vmul.f32 0.5, %v930
        %v932 = vsub.f32 1.5, %v931
        %v933 = vmul.f32 %v928, %v932
        %vm934 = vweird.f32 %v927
        %vm935 = vweird.f32 %v928
        %vm936 = vmor %vm934, %vm935
        %v937 = vsel %vm936, %v928, %v933
        %v938 = vld [vmem:[%s8] sm:$0xff]
        %v939 = vmul.f32 %v937, %v938
        %v940 = vld [vmem:[%s10] sm:$0xff]
        %942 = vset.pattern.permute.xlu0 0
        %943 = vperm.xlu0 %942, %v940
        %v944 = vpop.permute.xlu0 %943
        %v946 = vsub.f32 %v904, %v944
        %v947 = vsub.f32 %v924, %v944
        %949 = vset.pattern.permute.xlu0 0
        %950 = vperm.xlu0 %949, %v939
        %v951 = vpop.permute.xlu0 %950
        %v953 = vmul.f32 %v946, %v951
        %v954 = vmul.f32 %v947, %v951
        %v955 = vld [vmem:[%s9] sm:$0xff]
        %957 = vset.pattern.permute.xlu0 0
        %958 = vperm.xlu0 %957, %v955
        %v959 = vpop.permute.xlu0 %958
        %v961 = vadd.f32 %v953, %v959
        %v962 = vadd.f32 %v954, %v959
        %v963 = vadd.f32 %v961, %v412
        %v964 = vadd.f32 %v962, %v413
        %965 = vst [vmem:[%s406] sm:$0xff] %v963
        %966 = vst [vmem:[%s406 + $0x8] sm:$0xff] %v964
        %s967 = sand.u32 %s291, 1
        %s968 = scalar_lea.sflag [#allocation3], %s967
        %s969 = sand.u32 %s291, 1
        %s970 = smul.addr %s969, 16
        %s971 = scalar_lea.vmem [#allocation2], %s970
        // Predicated region
        $region69: #{tpu_custom_call.1} parent=67 // pred_check
          %p972 = pneg %p301
        $region70: #{tpu_custom_call.1} parent=67 // pred_check_branch
          %974 = sbr.rel (%p972) target = $region72
        $region71: #{tpu_custom_call.1} parent=67 // pred_region
          %976 = vsyncadd %s968, 0
          %s977 = smul.addr %s26, 2
          %s978 = smul.addr %s977, 8
          %s979 = scalar_lea.hbm %s12, %s978
          %s981 = sshll.u32 %s971, 4
          %s982 = int_to_ptr.vmem [resolvable:$true] %s981
          %s983 = sshll.u32 %s979, 4
          %s984 = int_to_ptr.hbm [resolvable:$true] %s983
          %986 = dma.vmem_to_hbm [thread:$0]  %s982, 256, %s984, %s968
        $region72: #{tpu_custom_call.1} parent=67 // pred_fallthru
          _
      $region68: #{tpu_custom_call.1} parent=5 // pred_fallthru
        _
      %p987 = scmp.le.s32.totalorder 2, %s21
      // Predicated region
      $region73: #{tpu_custom_call.1} parent=5 // pred_check
        %p988 = pneg %p987
      $region74: #{tpu_custom_call.1} parent=5 // pred_check_branch
        %990 = sbr.rel (%p988) target = $region76
      $region75: #{tpu_custom_call.1} parent=5 // pred_region
        %s991 = ssub.s32 %s21, 2
        // Predicated region
        $region77: #{tpu_custom_call.1} parent=75 // pred_check
          %p992 = pneg %p307
        $region78: #{tpu_custom_call.1} parent=75 // pred_check_branch
          %994 = sbr.rel (%p992) target = $region80
        $region79: #{tpu_custom_call.1} parent=75 // pred_region
          %s995 = sand.u32 %s292, 1
          %s996 = scalar_lea.sflag [#allocation3], %s995
          %s997 = sand.u32 %s292, 1
          %s998 = smul.addr %s997, 16
          %s999 = scalar_lea.vmem [#allocation2], %s998
          %1001 = dma.done %s996, 256
        $region80: #{tpu_custom_call.1} parent=75 // pred_fallthru
          _
      $region76: #{tpu_custom_call.1} parent=5 // pred_fallthru
        _
    $region6: #{tpu_custom_call.1} parent=1 // loop_footer
      %s25 = sadd.s32 1, %s21
    $region7: #{tpu_custom_call.1} parent=1 // loop_footer_branch
      %20 = sbr.rel target = $region3
    $region8: #{tpu_custom_call.1} parent=1 // loop_exit
      _
    %1002 = vsyncpa [#allocation3], 1
    %s1003 = scalar_lea.sflag [#allocation3], 1
    %1004 = vsyncpa %s1003, 1

</llo_original>
